<compile_context>
chip_gen: v7x
topology: tpu7x:2x2x1
jax: 0.10.0
libtpu: 0.0.40
codegen_flags: <defaults>
</compile_context>

<pallas_src>
import jax
import jax.numpy as jnp
from jax.experimental import pallas as pl
from jax.experimental.pallas import tpu as pltpu

EMB_DIM = 32


def _embed_kernel(x_ref, w_ref, b_ref, out_ref):
    # Single fused MXU matmul (bf16 inputs, f32 accumulation).
    acc = jnp.dot(x_ref[...], w_ref[...], preferred_element_type=jnp.float32)
    acc = acc + b_ref[...]                                   # fused bias (f32)
    # "where did I see it" difference is already folded into W; L2 normalize.
    inv_norm = jax.lax.rsqrt(jnp.sum(acc * acc, axis=-1, keepdims=True) + 1e-12)
    out_ref[...] = (acc * inv_norm).astype(out_ref.dtype)


def siamese_embed(x, w, b):
    """x: (M, 2D) bf16 fused [fg|bg] activations, w: (2D, E) bf16 fused weights,
    b: (1, E) f32 fused bias.  Returns (M, E) f32 L2-normalized embeddings."""
    M, K = x.shape
    K2, E = w.shape
    assert K == K2 and b.shape == (1, E)

    # Row tiling: pick the largest sublane-aligned tile dividing M; otherwise
    # use one full-extent block (block_shape == array dim is always legal).
    tm = M
    for cand in (256, 128, 64, 32, 16, 8):
        if M % cand == 0:
            tm = cand
            break
    grid = (M // tm,)

    return pl.pallas_call(
        _embed_kernel,
        out_shape=jax.ShapeDtypeStruct((M, E), jnp.float32),
        grid=grid,
        in_specs=[
            pl.BlockSpec((tm, K), lambda i: (i, 0)),
            pl.BlockSpec((K, E), lambda i: (0, 0)),   # weights VMEM-resident
            pl.BlockSpec((1, E), lambda i: (0, 0)),   # single fused bias
        ],
        out_specs=pl.BlockSpec((tm, E), lambda i: (i, 0)),
        compiler_params=pltpu.CompilerParams(
            dimension_semantics=("parallel",)),
    )(x, w, b)


def init_net_params(key, in_dim, emb_dim=EMB_DIM):
    """Deterministic synthetic weights for the two-stream embedder (f32 master)."""
    k1, k2 = jax.random.split(key)
    scale = 1.0 / jnp.sqrt(jnp.float32(in_dim))
    w_fg = jax.random.normal(k1, (in_dim, emb_dim), jnp.float32) * scale
    w_bg = jax.random.normal(k2, (in_dim, emb_dim), jnp.float32) * scale
    b_fg = jnp.zeros((1, emb_dim), jnp.float32)
    b_bg = jnp.zeros((1, emb_dim), jnp.float32)
    return w_fg, w_bg, b_fg, b_bg


def fuse_net_params(w_fg, w_bg, b_fg, b_bg):
    """Precompute the fused kernel parameters once (not per forward call)."""
    w_fused = jnp.concatenate([w_fg, -w_bg], axis=0).astype(jnp.bfloat16)  # (2D, E)
    b_fused = (b_fg - b_bg).astype(jnp.float32)                            # (1, E)
    return w_fused, b_fused


def where_did_i_see_it_forward(batch, fused_params):
    """Mirrors WhereDidISeeIt.forward: concat fg / bg along batch, run net."""
    # TODO(synk): criterion/optimizer/scheduler and train_step loss are training
    # machinery outside the forward pass and are not translated.
    # Build X = [fg_flat | bg_flat] per row in ONE concatenate + ONE bf16 cast
    # (avoids separate concat / reshape / astype HBM round trips per stream).
    rows = []
    for fg_img, bg_img in batch["images"]:
        b = fg_img.shape[0]
        rows.append(jnp.concatenate(
            [fg_img.reshape(b, -1), bg_img.reshape(b, -1)], axis=-1))
    x = jnp.concatenate(rows, axis=0).astype(jnp.bfloat16)   # (M, 2D)
    w_fused, b_fused = fused_params
    return siamese_embed(x, w_fused, b_fused)


if __name__ == "__main__":
    key = jax.random.PRNGKey(0)
    B, C, H, W = 2, 4, 16, 16        # small shapes per image view
    N_VIEWS = 3                      # e.g. anchor / positive / negative pairs
    D = C * H * W

    k_params, k_data = jax.random.split(key)
    raw_params = init_net_params(k_params, in_dim=D, emb_dim=EMB_DIM)
    fused_params = fuse_net_params(*raw_params)

    # batch['images'] = list of (fg, bg) NCHW tensor pairs, as in the PyTorch module.
    images = []
    for _ in range(N_VIEWS):
        kf, kb, k_data = jax.random.split(k_data, 3)
        images.append((jax.random.normal(kf, (B, C, H, W), jnp.float32),
                       jax.random.normal(kb, (B, C, H, W), jnp.float32)))
    batch = {"images": images, "label": jnp.arange(B, dtype=jnp.int32)}

    out = jax.block_until_ready(where_did_i_see_it_forward(batch, fused_params))

    assert out.shape == (N_VIEWS * B, EMB_DIM), out.shape
    assert out.dtype == jnp.float32

    # Pure-JAX f32 reference of the same two-stream math.  Kernel computes the
    # matmul in bf16 (f32 accumulation), so compare at bf16-appropriate tolerance.
    w_fg, w_bg, b_fg, b_bg = raw_params
    fg = jnp.concatenate([p[0] for p in images], 0).reshape(N_VIEWS * B, -1)
    bg = jnp.concatenate([p[1] for p in images], 0).reshape(N_VIEWS * B, -1)
    ref = (fg @ w_fg + b_fg) - (bg @ w_bg + b_bg)
    ref = ref / jnp.sqrt(jnp.sum(ref * ref, axis=-1, keepdims=True) + 1e-12)
    err = float(jnp.max(jnp.abs(out - ref)))
    assert jnp.allclose(out, ref, atol=2e-2, rtol=2e-2), err

    print("KERNEL_OK")
</pallas_src>

<mosaic_0001>
module attributes {stable_mosaic.version = 11 : i64} {
  func.func @_embed_kernel(%arg0: i32, %arg1: memref<6x2048xbf16, #tpu.memory_space<vmem>>, %arg2: memref<2048x32xbf16, #tpu.memory_space<vmem>>, %arg3: memref<1x32xf32, #tpu.memory_space<vmem>>, %arg4: memref<6x32xf32, #tpu.memory_space<vmem>>) attributes {dimension_semantics = [#tpu.dimension_semantics<parallel>], iteration_bounds = array<i64: 1>, scalar_prefetch = 0 : i64, scratch_operands = 0 : i64, tpu.core_type = #tpu.core_type<tc>, window_params = [{transform_indices = @transform_0, window_bounds = array<i64: 6, 2048>}, {pipeline_mode = #tpu.pipeline_mode<synchronous>, transform_indices = @transform_1, window_bounds = array<i64: 2048, 32>}, {pipeline_mode = #tpu.pipeline_mode<synchronous>, transform_indices = @transform_2, window_bounds = array<i64: 1, 32>}, {transform_indices = @transform_3, window_bounds = array<i64: 6, 32>}]} {
    %c0 = arith.constant 0 : index
    %c0_0 = arith.constant 0 : index
    %0 = vector.load %arg1[%c0, %c0_0] : memref<6x2048xbf16, #tpu.memory_space<vmem>>, vector<6x2048xbf16>
    %c0_1 = arith.constant 0 : index
    %c0_2 = arith.constant 0 : index
    %1 = vector.load %arg2[%c0_1, %c0_2] : memref<2048x32xbf16, #tpu.memory_space<vmem>>, vector<2048x32xbf16>
    %cst = arith.constant dense<0.000000e+00> : vector<6x32xf32>
    %2 = tpu.matmul %0, %1, %cst {dimension_numbers = #tpu.dot_dimension_numbers<[1], [0], [0], [1], [0, 0, 1, 1], [], []>} : vector<6x2048xbf16>, vector<2048x32xbf16>, vector<6x32xf32> -> vector<6x32xf32>
    %c0_3 = arith.constant 0 : index
    %c0_4 = arith.constant 0 : index
    %3 = vector.load %arg3[%c0_3, %c0_4] : memref<1x32xf32, #tpu.memory_space<vmem>>, vector<1x32xf32>
    %4 = vector.broadcast %3 : vector<1x32xf32> to vector<6x32xf32>
    %5 = arith.addf %2, %4 : vector<6x32xf32>
    %6 = arith.mulf %5, %5 : vector<6x32xf32>
    %cst_5 = arith.constant dense<0.000000e+00> : vector<6xf32>
    %7 = vector.multi_reduction <add>, %6, %cst_5 [1] : vector<6x32xf32> to vector<6xf32>
    %8 = vector.shape_cast %7 : vector<6xf32> to vector<6x1xf32>
    %cst_6 = arith.constant 9.99999996E-13 : f32
    %9 = vector.broadcast %cst_6 : f32 to vector<6x1xf32>
    %10 = arith.addf %8, %9 : vector<6x1xf32>
    %11 = math.rsqrt %10 : vector<6x1xf32>
    %12 = vector.broadcast %11 : vector<6x1xf32> to vector<6x32xf32>
    %13 = arith.mulf %5, %12 : vector<6x32xf32>
    %c0_7 = arith.constant 0 : index
    %c0_8 = arith.constant 0 : index
    %14 = vector.load %arg4[%c0_7, %c0_8] : memref<6x32xf32, #tpu.memory_space<vmem>>, vector<6x32xf32>
    tpu.vector_store %arg4[%c0_7, %c0_8], %13 {strides = array<i32>} : memref<6x32xf32, #tpu.memory_space<vmem>>, vector<6x32xf32>,
    return
  }
  func.func @transform_0(%arg0: i32) -> (i32, i32) {
    %c0_i32 = arith.constant 0 : i32
    %c0_i32_0 = arith.constant 0 : i32
    return %arg0, %c0_i32 : i32, i32
  }
  func.func @transform_1(%arg0: i32) -> (i32, i32) {
    %c0_i32 = arith.constant 0 : i32
    %c0_i32_0 = arith.constant 0 : i32
    %c0_i32_1 = arith.constant 0 : i32
    return %c0_i32, %c0_i32_0 : i32, i32
  }
  func.func @transform_2(%arg0: i32) -> (i32, i32) {
    %c0_i32 = arith.constant 0 : i32
    %c0_i32_0 = arith.constant 0 : i32
    %c0_i32_1 = arith.constant 0 : i32
    return %c0_i32, %c0_i32_0 : i32, i32
  }
  func.func @transform_3(%arg0: i32) -> (i32, i32) {
    %c0_i32 = arith.constant 0 : i32
    %c0_i32_0 = arith.constant 0 : i32
    return %arg0, %c0_i32 : i32, i32
  }
}

</mosaic_0001>

<llo_original>
// kernel: tpu_custom_call.1
$region0: #{tpu_custom_call.1}
  #allocation0 [shape = 'u32[]', space=smem, size = 0x4, offset = 0x4, fixed_abs, tag = 'smem constant byte address 0x4 - core index']
  #allocation1 [shape = 'u32[144,128]{1,0:T(1,128)}', space=vmem, size = 0x12000, scoped, tag = 'internal scratch']
  %s0 = inlined_call_operand.vmem [shape: bf16[6,2048], index: 0, kind: input, shape index: {}]
  %s1 = inlined_call_operand.vmem [shape: bf16[2048,32], index: 1, kind: input, shape index: {}]
  %s2 = inlined_call_operand.vmem [shape: f32[1,32], index: 2, kind: input, shape index: {}]
  %s3 = inlined_call_operand.hbm [shape: f32[6,32], index: 3, kind: output, shape index: {}]
  %s4 = sld [smem:[#allocation0]]
  $region22: #{tpu_custom_call.1} parent=0
    _
  %s6 = ssub.s32 1, %s4
  %s7 = scalar_select 0, %s6, %s4
  $region1: #{tpu_custom_call.1} parent=0
    #allocation2 [shape = 'u8[4096]{0}', space=vmem, size = 0x1000, scoped, tag = 'output window, operand 0, single buffered']
    #allocation3 [shape = 's32[1]{0}', space=sflag, size = 0x4, scoped, tag = 'scoped memory for tpu_custom_call.1']
    %8 = vsyncpa [#allocation3], 0
    // Predicated region
    $region2: #{tpu_custom_call.1} parent=1 // pred_check
      _
    $region3: #{tpu_custom_call.1} parent=1 // pred_check_branch
      %10 = sbr.rel (0) target = $region5
    $region4: #{tpu_custom_call.1} parent=1 // pred_region
      _
    $region5: #{tpu_custom_call.1} parent=1 // pred_fallthru
      _
    // Predicated region
    $region6: #{tpu_custom_call.1} parent=1 // pred_check
      _
    $region7: #{tpu_custom_call.1} parent=1 // pred_check_branch
      %12 = sbr.rel (0) target = $region9
    $region8: #{tpu_custom_call.1} parent=1 // pred_region
      _
    $region9: #{tpu_custom_call.1} parent=1 // pred_fallthru
      _
    // Predicated region
    $region10: #{tpu_custom_call.1} parent=1 // pred_check
      _
    $region11: #{tpu_custom_call.1} parent=1 // pred_check_branch
      %14 = sbr.rel (0) target = $region13
    $region12: #{tpu_custom_call.1} parent=1 // pred_region
      _
    $region13: #{tpu_custom_call.1} parent=1 // pred_fallthru
      _
    %v16 = vld [vmem:[%s0] sm:$0x77]
    %v17 = vld [vmem:[%s0 + $0x8] sm:$0x77]
    %v18 = vld [vmem:[%s0 + $0x10] sm:$0x77]
    %v19 = vld [vmem:[%s0 + $0x18] sm:$0x77]
    %v20 = vld [vmem:[%s0 + $0x20] sm:$0x77]
    %v21 = vld [vmem:[%s0 + $0x28] sm:$0x77]
    %v22 = vld [vmem:[%s0 + $0x30] sm:$0x77]
    %v23 = vld [vmem:[%s0 + $0x38] sm:$0x77]
    %v24 = vld [vmem:[%s1] sm:$0xf]
    %v25 = vld [vmem:[%s1 + $0x4] sm:$0xf]
    %v26 = vld [vmem:[%s1 + $0x8] sm:$0xf]
    %v27 = vld [vmem:[%s1 + $0xc] sm:$0xf]
    %v28 = vld [vmem:[%s1 + $0x10] sm:$0xf]
    %v29 = vld [vmem:[%s1 + $0x14] sm:$0xf]
    %v30 = vld [vmem:[%s1 + $0x18] sm:$0xf]
    %v31 = vld [vmem:[%s1 + $0x1c] sm:$0xf]
    %v32 = vld [vmem:[%s1 + $0x20] sm:$0xf]
    %v33 = vld [vmem:[%s1 + $0x24] sm:$0xf]
    %v34 = vld [vmem:[%s1 + $0x28] sm:$0xf]
    %v35 = vld [vmem:[%s1 + $0x2c] sm:$0xf]
    %v36 = vld [vmem:[%s1 + $0x30] sm:$0xf]
    %v37 = vld [vmem:[%s1 + $0x34] sm:$0xf]
    %v38 = vld [vmem:[%s1 + $0x38] sm:$0xf]
    %v39 = vld [vmem:[%s1 + $0x3c] sm:$0xf]
    %v40 = vld [vmem:[%s1 + $0x40] sm:$0xf]
    %v41 = vld [vmem:[%s1 + $0x44] sm:$0xf]
    %v42 = vld [vmem:[%s1 + $0x48] sm:$0xf]
    %v43 = vld [vmem:[%s1 + $0x4c] sm:$0xf]
    %v44 = vld [vmem:[%s1 + $0x50] sm:$0xf]
    %v45 = vld [vmem:[%s1 + $0x54] sm:$0xf]
    %v46 = vld [vmem:[%s1 + $0x58] sm:$0xf]
    %v47 = vld [vmem:[%s1 + $0x5c] sm:$0xf]
    %v48 = vld [vmem:[%s1 + $0x60] sm:$0xf]
    %v49 = vld [vmem:[%s1 + $0x64] sm:$0xf]
    %v50 = vld [vmem:[%s1 + $0x68] sm:$0xf]
    %v51 = vld [vmem:[%s1 + $0x6c] sm:$0xf]
    %v52 = vld [vmem:[%s1 + $0x70] sm:$0xf]
    %v53 = vld [vmem:[%s1 + $0x74] sm:$0xf]
    %v54 = vld [vmem:[%s1 + $0x78] sm:$0xf]
    %v55 = vld [vmem:[%s1 + $0x7c] sm:$0xf]
    %v56 = vld [vmem:[%s1 + $0x80] sm:$0xf]
    %v57 = vld [vmem:[%s1 + $0x84] sm:$0xf]
    %v58 = vld [vmem:[%s1 + $0x88] sm:$0xf]
    %v59 = vld [vmem:[%s1 + $0x8c] sm:$0xf]
    %v60 = vld [vmem:[%s1 + $0x90] sm:$0xf]
    %v61 = vld [vmem:[%s1 + $0x94] sm:$0xf]
    %v62 = vld [vmem:[%s1 + $0x98] sm:$0xf]
    %v63 = vld [vmem:[%s1 + $0x9c] sm:$0xf]
    %v64 = vld [vmem:[%s1 + $0xa0] sm:$0xf]
    %v65 = vld [vmem:[%s1 + $0xa4] sm:$0xf]
    %v66 = vld [vmem:[%s1 + $0xa8] sm:$0xf]
    %v67 = vld [vmem:[%s1 + $0xac] sm:$0xf]
    %v68 = vld [vmem:[%s1 + $0xb0] sm:$0xf]
    %v69 = vld [vmem:[%s1 + $0xb4] sm:$0xf]
    %v70 = vld [vmem:[%s1 + $0xb8] sm:$0xf]
    %v71 = vld [vmem:[%s1 + $0xbc] sm:$0xf]
    %v72 = vld [vmem:[%s1 + $0xc0] sm:$0xf]
    %v73 = vld [vmem:[%s1 + $0xc4] sm:$0xf]
    %v74 = vld [vmem:[%s1 + $0xc8] sm:$0xf]
    %v75 = vld [vmem:[%s1 + $0xcc] sm:$0xf]
    %v76 = vld [vmem:[%s1 + $0xd0] sm:$0xf]
    %v77 = vld [vmem:[%s1 + $0xd4] sm:$0xf]
    %v78 = vld [vmem:[%s1 + $0xd8] sm:$0xf]
    %v79 = vld [vmem:[%s1 + $0xdc] sm:$0xf]
    %v80 = vld [vmem:[%s1 + $0xe0] sm:$0xf]
    %v81 = vld [vmem:[%s1 + $0xe4] sm:$0xf]
    %v82 = vld [vmem:[%s1 + $0xe8] sm:$0xf]
    %v83 = vld [vmem:[%s1 + $0xec] sm:$0xf]
    %v84 = vld [vmem:[%s1 + $0xf0] sm:$0xf]
    %v85 = vld [vmem:[%s1 + $0xf4] sm:$0xf]
    %v86 = vld [vmem:[%s1 + $0xf8] sm:$0xf]
    %v87 = vld [vmem:[%s1 + $0xfc] sm:$0xf]
    %v88 = vld [vmem:[%s1 + $0x100] sm:$0xf]
    %v89 = vld [vmem:[%s1 + $0x104] sm:$0xf]
    %v90 = vld [vmem:[%s1 + $0x108] sm:$0xf]
    %v91 = vld [vmem:[%s1 + $0x10c] sm:$0xf]
    %v92 = vld [vmem:[%s1 + $0x110] sm:$0xf]
    %v93 = vld [vmem:[%s1 + $0x114] sm:$0xf]
    %v94 = vld [vmem:[%s1 + $0x118] sm:$0xf]
    %v95 = vld [vmem:[%s1 + $0x11c] sm:$0xf]
    %v96 = vld [vmem:[%s1 + $0x120] sm:$0xf]
    %v97 = vld [vmem:[%s1 + $0x124] sm:$0xf]
    %v98 = vld [vmem:[%s1 + $0x128] sm:$0xf]
    %v99 = vld [vmem:[%s1 + $0x12c] sm:$0xf]
    %v100 = vld [vmem:[%s1 + $0x130] sm:$0xf]
    %v101 = vld [vmem:[%s1 + $0x134] sm:$0xf]
    %v102 = vld [vmem:[%s1 + $0x138] sm:$0xf]
    %v103 = vld [vmem:[%s1 + $0x13c] sm:$0xf]
    %v104 = vld [vmem:[%s1 + $0x140] sm:$0xf]
    %v105 = vld [vmem:[%s1 + $0x144] sm:$0xf]
    %v106 = vld [vmem:[%s1 + $0x148] sm:$0xf]
    %v107 = vld [vmem:[%s1 + $0x14c] sm:$0xf]
    %v108 = vld [vmem:[%s1 + $0x150] sm:$0xf]
    %v109 = vld [vmem:[%s1 + $0x154] sm:$0xf]
    %v110 = vld [vmem:[%s1 + $0x158] sm:$0xf]
    %v111 = vld [vmem:[%s1 + $0x15c] sm:$0xf]
    %v112 = vld [vmem:[%s1 + $0x160] sm:$0xf]
    %v113 = vld [vmem:[%s1 + $0x164] sm:$0xf]
    %v114 = vld [vmem:[%s1 + $0x168] sm:$0xf]
    %v115 = vld [vmem:[%s1 + $0x16c] sm:$0xf]
    %v116 = vld [vmem:[%s1 + $0x170] sm:$0xf]
    %v117 = vld [vmem:[%s1 + $0x174] sm:$0xf]
    %v118 = vld [vmem:[%s1 + $0x178] sm:$0xf]
    %v119 = vld [vmem:[%s1 + $0x17c] sm:$0xf]
    %v120 = vld [vmem:[%s1 + $0x180] sm:$0xf]
    %v121 = vld [vmem:[%s1 + $0x184] sm:$0xf]
    %v122 = vld [vmem:[%s1 + $0x188] sm:$0xf]
    %v123 = vld [vmem:[%s1 + $0x18c] sm:$0xf]
    %v124 = vld [vmem:[%s1 + $0x190] sm:$0xf]
    %v125 = vld [vmem:[%s1 + $0x194] sm:$0xf]
    %v126 = vld [vmem:[%s1 + $0x198] sm:$0xf]
    %v127 = vld [vmem:[%s1 + $0x19c] sm:$0xf]
    %v128 = vld [vmem:[%s1 + $0x1a0] sm:$0xf]
    %v129 = vld [vmem:[%s1 + $0x1a4] sm:$0xf]
    %v130 = vld [vmem:[%s1 + $0x1a8] sm:$0xf]
    %v131 = vld [vmem:[%s1 + $0x1ac] sm:$0xf]
    %v132 = vld [vmem:[%s1 + $0x1b0] sm:$0xf]
    %v133 = vld [vmem:[%s1 + $0x1b4] sm:$0xf]
    %v134 = vld [vmem:[%s1 + $0x1b8] sm:$0xf]
    %v135 = vld [vmem:[%s1 + $0x1bc] sm:$0xf]
    %v136 = vld [vmem:[%s1 + $0x1c0] sm:$0xf]
    %v137 = vld [vmem:[%s1 + $0x1c4] sm:$0xf]
    %v138 = vld [vmem:[%s1 + $0x1c8] sm:$0xf]
    %v139 = vld [vmem:[%s1 + $0x1cc] sm:$0xf]
    %v140 = vld [vmem:[%s1 + $0x1d0] sm:$0xf]
    %v141 = vld [vmem:[%s1 + $0x1d4] sm:$0xf]
    %v142 = vld [vmem:[%s1 + $0x1d8] sm:$0xf]
    %v143 = vld [vmem:[%s1 + $0x1dc] sm:$0xf]
    %v144 = vld [vmem:[%s1 + $0x1e0] sm:$0xf]
    %v145 = vld [vmem:[%s1 + $0x1e4] sm:$0xf]
    %v146 = vld [vmem:[%s1 + $0x1e8] sm:$0xf]
    %v147 = vld [vmem:[%s1 + $0x1ec] sm:$0xf]
    %v148 = vld [vmem:[%s1 + $0x1f0] sm:$0xf]
    %v149 = vld [vmem:[%s1 + $0x1f4] sm:$0xf]
    %v150 = vld [vmem:[%s1 + $0x1f8] sm:$0xf]
    %v151 = vld [vmem:[%s1 + $0x1fc] sm:$0xf]
    %v152 = vld [vmem:[%s1 + $0x200] sm:$0xf]
    %v153 = vld [vmem:[%s1 + $0x204] sm:$0xf]
    %v154 = vld [vmem:[%s1 + $0x208] sm:$0xf]
    %v155 = vld [vmem:[%s1 + $0x20c] sm:$0xf]
    %v156 = vld [vmem:[%s1 + $0x210] sm:$0xf]
    %v157 = vld [vmem:[%s1 + $0x214] sm:$0xf]
    %v158 = vld [vmem:[%s1 + $0x218] sm:$0xf]
    %v159 = vld [vmem:[%s1 + $0x21c] sm:$0xf]
    %v160 = vld [vmem:[%s1 + $0x220] sm:$0xf]
    %v161 = vld [vmem:[%s1 + $0x224] sm:$0xf]
    %v162 = vld [vmem:[%s1 + $0x228] sm:$0xf]
    %v163 = vld [vmem:[%s1 + $0x22c] sm:$0xf]
    %v164 = vld [vmem:[%s1 + $0x230] sm:$0xf]
    %v165 = vld [vmem:[%s1 + $0x234] sm:$0xf]
    %v166 = vld [vmem:[%s1 + $0x238] sm:$0xf]
    %v167 = vld [vmem:[%s1 + $0x23c] sm:$0xf]
    %v168 = vld [vmem:[%s1 + $0x240] sm:$0xf]
    %v169 = vld [vmem:[%s1 + $0x244] sm:$0xf]
    %v170 = vld [vmem:[%s1 + $0x248] sm:$0xf]
    %v171 = vld [vmem:[%s1 + $0x24c] sm:$0xf]
    %v172 = vld [vmem:[%s1 + $0x250] sm:$0xf]
    %v173 = vld [vmem:[%s1 + $0x254] sm:$0xf]
    %v174 = vld [vmem:[%s1 + $0x258] sm:$0xf]
    %v175 = vld [vmem:[%s1 + $0x25c] sm:$0xf]
    %v176 = vld [vmem:[%s1 + $0x260] sm:$0xf]
    %v177 = vld [vmem:[%s1 + $0x264] sm:$0xf]
    %v178 = vld [vmem:[%s1 + $0x268] sm:$0xf]
    %v179 = vld [vmem:[%s1 + $0x26c] sm:$0xf]
    %v180 = vld [vmem:[%s1 + $0x270] sm:$0xf]
    %v181 = vld [vmem:[%s1 + $0x274] sm:$0xf]
    %v182 = vld [vmem:[%s1 + $0x278] sm:$0xf]
    %v183 = vld [vmem:[%s1 + $0x27c] sm:$0xf]
    %v184 = vld [vmem:[%s1 + $0x280] sm:$0xf]
    %v185 = vld [vmem:[%s1 + $0x284] sm:$0xf]
    %v186 = vld [vmem:[%s1 + $0x288] sm:$0xf]
    %v187 = vld [vmem:[%s1 + $0x28c] sm:$0xf]
    %v188 = vld [vmem:[%s1 + $0x290] sm:$0xf]
    %v189 = vld [vmem:[%s1 + $0x294] sm:$0xf]
    %v190 = vld [vmem:[%s1 + $0x298] sm:$0xf]
    %v191 = vld [vmem:[%s1 + $0x29c] sm:$0xf]
    %v192 = vld [vmem:[%s1 + $0x2a0] sm:$0xf]
    %v193 = vld [vmem:[%s1 + $0x2a4] sm:$0xf]
    %v194 = vld [vmem:[%s1 + $0x2a8] sm:$0xf]
    %v195 = vld [vmem:[%s1 + $0x2ac] sm:$0xf]
    %v196 = vld [vmem:[%s1 + $0x2b0] sm:$0xf]
    %v197 = vld [vmem:[%s1 + $0x2b4] sm:$0xf]
    %v198 = vld [vmem:[%s1 + $0x2b8] sm:$0xf]
    %v199 = vld [vmem:[%s1 + $0x2bc] sm:$0xf]
    %v200 = vld [vmem:[%s1 + $0x2c0] sm:$0xf]
    %v201 = vld [vmem:[%s1 + $0x2c4] sm:$0xf]
    %v202 = vld [vmem:[%s1 + $0x2c8] sm:$0xf]
    %v203 = vld [vmem:[%s1 + $0x2cc] sm:$0xf]
    %v204 = vld [vmem:[%s1 + $0x2d0] sm:$0xf]
    %v205 = vld [vmem:[%s1 + $0x2d4] sm:$0xf]
    %v206 = vld [vmem:[%s1 + $0x2d8] sm:$0xf]
    %v207 = vld [vmem:[%s1 + $0x2dc] sm:$0xf]
    %v208 = vld [vmem:[%s1 + $0x2e0] sm:$0xf]
    %v209 = vld [vmem:[%s1 + $0x2e4] sm:$0xf]
    %v210 = vld [vmem:[%s1 + $0x2e8] sm:$0xf]
    %v211 = vld [vmem:[%s1 + $0x2ec] sm:$0xf]
    %v212 = vld [vmem:[%s1 + $0x2f0] sm:$0xf]
    %v213 = vld [vmem:[%s1 + $0x2f4] sm:$0xf]
    %v214 = vld [vmem:[%s1 + $0x2f8] sm:$0xf]
    %v215 = vld [vmem:[%s1 + $0x2fc] sm:$0xf]
    %v216 = vld [vmem:[%s1 + $0x300] sm:$0xf]
    %v217 = vld [vmem:[%s1 + $0x304] sm:$0xf]
    %v218 = vld [vmem:[%s1 + $0x308] sm:$0xf]
    %v219 = vld [vmem:[%s1 + $0x30c] sm:$0xf]
    %v220 = vld [vmem:[%s1 + $0x310] sm:$0xf]
    %v221 = vld [vmem:[%s1 + $0x314] sm:$0xf]
    %v222 = vld [vmem:[%s1 + $0x318] sm:$0xf]
    %v223 = vld [vmem:[%s1 + $0x31c] sm:$0xf]
    %v224 = vld [vmem:[%s1 + $0x320] sm:$0xf]
    %v225 = vld [vmem:[%s1 + $0x324] sm:$0xf]
    %v226 = vld [vmem:[%s1 + $0x328] sm:$0xf]
    %v227 = vld [vmem:[%s1 + $0x32c] sm:$0xf]
    %v228 = vld [vmem:[%s1 + $0x330] sm:$0xf]
    %v229 = vld [vmem:[%s1 + $0x334] sm:$0xf]
    %v230 = vld [vmem:[%s1 + $0x338] sm:$0xf]
    %v231 = vld [vmem:[%s1 + $0x33c] sm:$0xf]
    %v232 = vld [vmem:[%s1 + $0x340] sm:$0xf]
    %v233 = vld [vmem:[%s1 + $0x344] sm:$0xf]
    %v234 = vld [vmem:[%s1 + $0x348] sm:$0xf]
    %v235 = vld [vmem:[%s1 + $0x34c] sm:$0xf]
    %v236 = vld [vmem:[%s1 + $0x350] sm:$0xf]
    %v237 = vld [vmem:[%s1 + $0x354] sm:$0xf]
    %v238 = vld [vmem:[%s1 + $0x358] sm:$0xf]
    %v239 = vld [vmem:[%s1 + $0x35c] sm:$0xf]
    %v240 = vld [vmem:[%s1 + $0x360] sm:$0xf]
    %v241 = vld [vmem:[%s1 + $0x364] sm:$0xf]
    %v242 = vld [vmem:[%s1 + $0x368] sm:$0xf]
    %v243 = vld [vmem:[%s1 + $0x36c] sm:$0xf]
    %v244 = vld [vmem:[%s1 + $0x370] sm:$0xf]
    %v245 = vld [vmem:[%s1 + $0x374] sm:$0xf]
    %v246 = vld [vmem:[%s1 + $0x378] sm:$0xf]
    %v247 = vld [vmem:[%s1 + $0x37c] sm:$0xf]
    %v248 = vld [vmem:[%s1 + $0x380] sm:$0xf]
    %v249 = vld [vmem:[%s1 + $0x384] sm:$0xf]
    %v250 = vld [vmem:[%s1 + $0x388] sm:$0xf]
    %v251 = vld [vmem:[%s1 + $0x38c] sm:$0xf]
    %v252 = vld [vmem:[%s1 + $0x390] sm:$0xf]
    %v253 = vld [vmem:[%s1 + $0x394] sm:$0xf]
    %v254 = vld [vmem:[%s1 + $0x398] sm:$0xf]
    %v255 = vld [vmem:[%s1 + $0x39c] sm:$0xf]
    %v256 = vld [vmem:[%s1 + $0x3a0] sm:$0xf]
    %v257 = vld [vmem:[%s1 + $0x3a4] sm:$0xf]
    %v258 = vld [vmem:[%s1 + $0x3a8] sm:$0xf]
    %v259 = vld [vmem:[%s1 + $0x3ac] sm:$0xf]
    %v260 = vld [vmem:[%s1 + $0x3b0] sm:$0xf]
    %v261 = vld [vmem:[%s1 + $0x3b4] sm:$0xf]
    %v262 = vld [vmem:[%s1 + $0x3b8] sm:$0xf]
    %v263 = vld [vmem:[%s1 + $0x3bc] sm:$0xf]
    %v264 = vld [vmem:[%s1 + $0x3c0] sm:$0xf]
    %v265 = vld [vmem:[%s1 + $0x3c4] sm:$0xf]
    %v266 = vld [vmem:[%s1 + $0x3c8] sm:$0xf]
    %v267 = vld [vmem:[%s1 + $0x3cc] sm:$0xf]
    %v268 = vld [vmem:[%s1 + $0x3d0] sm:$0xf]
    %v269 = vld [vmem:[%s1 + $0x3d4] sm:$0xf]
    %v270 = vld [vmem:[%s1 + $0x3d8] sm:$0xf]
    %v271 = vld [vmem:[%s1 + $0x3dc] sm:$0xf]
    %v272 = vld [vmem:[%s1 + $0x3e0] sm:$0xf]
    %v273 = vld [vmem:[%s1 + $0x3e4] sm:$0xf]
    %v274 = vld [vmem:[%s1 + $0x3e8] sm:$0xf]
    %v275 = vld [vmem:[%s1 + $0x3ec] sm:$0xf]
    %v276 = vld [vmem:[%s1 + $0x3f0] sm:$0xf]
    %v277 = vld [vmem:[%s1 + $0x3f4] sm:$0xf]
    %v278 = vld [vmem:[%s1 + $0x3f8] sm:$0xf]
    %v279 = vld [vmem:[%s1 + $0x3fc] sm:$0xf]
    %v280 = vld [vmem:[%s2] sm:$0x1]
    %v282 = vlaneseq
    %v283 = vshrl.u32 %v282, 7
    %v284 = vsub.s32 0, %v283
    %v285 = vrot.slane %v280, %v284
    %v295 = vunpack.c.l.b16 %v16
    %v296 = vunpack.c.h.b16 %v16
    %v297 = vunpack.c.l.b16 %v17
    %v298 = vunpack.c.h.b16 %v17
    %v299 = vunpack.c.l.b16 %v18
    %v300 = vunpack.c.h.b16 %v18
    %v301 = vunpack.c.l.b16 %v19
    %v302 = vunpack.c.h.b16 %v19
    %v303 = vunpack.c.l.b16 %v20
    %v304 = vunpack.c.h.b16 %v20
    %v305 = vunpack.c.l.b16 %v21
    %v306 = vunpack.c.h.b16 %v21
    %v307 = vunpack.c.l.b16 %v22
    %v308 = vunpack.c.h.b16 %v22
    %v309 = vunpack.c.l.b16 %v23
    %v310 = vunpack.c.h.b16 %v23
    %v311 = vpack.c.b16 %v295, %v295
    %v312 = vpack.c.b16 %v296, %v296
    %v313 = vpack.c.b16 %v297, %v297
    %v314 = vpack.c.b16 %v298, %v298
    %v315 = vpack.c.b16 %v299, %v299
    %v316 = vpack.c.b16 %v300, %v300
    %v317 = vpack.c.b16 %v301, %v301
    %v318 = vpack.c.b16 %v302, %v302
    %v319 = vpack.c.b16 %v303, %v303
    %v320 = vpack.c.b16 %v304, %v304
    %v321 = vpack.c.b16 %v305, %v305
    %v322 = vpack.c.b16 %v306, %v306
    %v323 = vpack.c.b16 %v307, %v307
    %v324 = vpack.c.b16 %v308, %v308
    %v325 = vpack.c.b16 %v309, %v309
    %v326 = vpack.c.b16 %v310, %v310
    %v599 = vunpack.c.l.b16 %v24
    %v600 = vunpack.c.l.b16 %v25
    %v601 = vunpack.c.l.b16 %v26
    %v602 = vunpack.c.l.b16 %v27
    %v603 = vunpack.c.l.b16 %v28
    %v604 = vunpack.c.l.b16 %v29
    %v605 = vunpack.c.l.b16 %v30
    %v606 = vunpack.c.l.b16 %v31
    %v607 = vunpack.c.l.b16 %v32
    %v608 = vunpack.c.l.b16 %v33
    %v609 = vunpack.c.l.b16 %v34
    %v610 = vunpack.c.l.b16 %v35
    %v611 = vunpack.c.l.b16 %v36
    %v612 = vunpack.c.l.b16 %v37
    %v613 = vunpack.c.l.b16 %v38
    %v614 = vunpack.c.l.b16 %v39
    %v615 = vunpack.c.l.b16 %v40
    %v616 = vunpack.c.l.b16 %v41
    %v617 = vunpack.c.l.b16 %v42
    %v618 = vunpack.c.l.b16 %v43
    %v619 = vunpack.c.l.b16 %v44
    %v620 = vunpack.c.l.b16 %v45
    %v621 = vunpack.c.l.b16 %v46
    %v622 = vunpack.c.l.b16 %v47
    %v623 = vunpack.c.l.b16 %v48
    %v624 = vunpack.c.l.b16 %v49
    %v625 = vunpack.c.l.b16 %v50
    %v626 = vunpack.c.l.b16 %v51
    %v627 = vunpack.c.l.b16 %v52
    %v628 = vunpack.c.l.b16 %v53
    %v629 = vunpack.c.l.b16 %v54
    %v630 = vunpack.c.l.b16 %v55
    %v631 = vunpack.c.l.b16 %v56
    %v632 = vunpack.c.l.b16 %v57
    %v633 = vunpack.c.l.b16 %v58
    %v634 = vunpack.c.l.b16 %v59
    %v635 = vunpack.c.l.b16 %v60
    %v636 = vunpack.c.l.b16 %v61
    %v637 = vunpack.c.l.b16 %v62
    %v638 = vunpack.c.l.b16 %v63
    %v639 = vunpack.c.l.b16 %v64
    %v640 = vunpack.c.l.b16 %v65
    %v641 = vunpack.c.l.b16 %v66
    %v642 = vunpack.c.l.b16 %v67
    %v643 = vunpack.c.l.b16 %v68
    %v644 = vunpack.c.l.b16 %v69
    %v645 = vunpack.c.l.b16 %v70
    %v646 = vunpack.c.l.b16 %v71
    %v647 = vunpack.c.l.b16 %v72
    %v648 = vunpack.c.l.b16 %v73
    %v649 = vunpack.c.l.b16 %v74
    %v650 = vunpack.c.l.b16 %v75
    %v651 = vunpack.c.l.b16 %v76
    %v652 = vunpack.c.l.b16 %v77
    %v653 = vunpack.c.l.b16 %v78
    %v654 = vunpack.c.l.b16 %v79
    %v655 = vunpack.c.l.b16 %v80
    %v656 = vunpack.c.l.b16 %v81
    %v657 = vunpack.c.l.b16 %v82
    %v658 = vunpack.c.l.b16 %v83
    %v659 = vunpack.c.l.b16 %v84
    %v660 = vunpack.c.l.b16 %v85
    %v661 = vunpack.c.l.b16 %v86
    %v662 = vunpack.c.l.b16 %v87
    %v663 = vunpack.c.l.b16 %v88
    %v664 = vunpack.c.l.b16 %v89
    %v665 = vunpack.c.l.b16 %v90
    %v666 = vunpack.c.l.b16 %v91
    %v667 = vunpack.c.l.b16 %v92
    %v668 = vunpack.c.l.b16 %v93
    %v669 = vunpack.c.l.b16 %v94
    %v670 = vunpack.c.l.b16 %v95
    %v671 = vunpack.c.l.b16 %v96
    %v672 = vunpack.c.l.b16 %v97
    %v673 = vunpack.c.l.b16 %v98
    %v674 = vunpack.c.l.b16 %v99
    %v675 = vunpack.c.l.b16 %v100
    %v676 = vunpack.c.l.b16 %v101
    %v677 = vunpack.c.l.b16 %v102
    %v678 = vunpack.c.l.b16 %v103
    %v679 = vunpack.c.l.b16 %v104
    %v680 = vunpack.c.l.b16 %v105
    %v681 = vunpack.c.l.b16 %v106
    %v682 = vunpack.c.l.b16 %v107
    %v683 = vunpack.c.l.b16 %v108
    %v684 = vunpack.c.l.b16 %v109
    %v685 = vunpack.c.l.b16 %v110
    %v686 = vunpack.c.l.b16 %v111
    %v687 = vunpack.c.l.b16 %v112
    %v688 = vunpack.c.l.b16 %v113
    %v689 = vunpack.c.l.b16 %v114
    %v690 = vunpack.c.l.b16 %v115
    %v691 = vunpack.c.l.b16 %v116
    %v692 = vunpack.c.l.b16 %v117
    %v693 = vunpack.c.l.b16 %v118
    %v694 = vunpack.c.l.b16 %v119
    %v695 = vunpack.c.l.b16 %v120
    %v696 = vunpack.c.l.b16 %v121
    %v697 = vunpack.c.l.b16 %v122
    %v698 = vunpack.c.l.b16 %v123
    %v699 = vunpack.c.l.b16 %v124
    %v700 = vunpack.c.l.b16 %v125
    %v701 = vunpack.c.l.b16 %v126
    %v702 = vunpack.c.l.b16 %v127
    %v703 = vunpack.c.l.b16 %v128
    %v704 = vunpack.c.l.b16 %v129
    %v705 = vunpack.c.l.b16 %v130
    %v706 = vunpack.c.l.b16 %v131
    %v707 = vunpack.c.l.b16 %v132
    %v708 = vunpack.c.l.b16 %v133
    %v709 = vunpack.c.l.b16 %v134
    %v710 = vunpack.c.l.b16 %v135
    %v711 = vunpack.c.l.b16 %v136
    %v712 = vunpack.c.l.b16 %v137
    %v713 = vunpack.c.l.b16 %v138
    %v714 = vunpack.c.l.b16 %v139
    %v715 = vunpack.c.l.b16 %v140
    %v716 = vunpack.c.l.b16 %v141
    %v717 = vunpack.c.l.b16 %v142
    %v718 = vunpack.c.l.b16 %v143
    %v719 = vunpack.c.l.b16 %v144
    %v720 = vunpack.c.l.b16 %v145
    %v721 = vunpack.c.l.b16 %v146
    %v722 = vunpack.c.l.b16 %v147
    %v723 = vunpack.c.l.b16 %v148
    %v724 = vunpack.c.l.b16 %v149
    %v725 = vunpack.c.l.b16 %v150
    %v726 = vunpack.c.l.b16 %v151
    %v727 = vunpack.c.l.b16 %v152
    %v728 = vunpack.c.l.b16 %v153
    %v729 = vunpack.c.l.b16 %v154
    %v730 = vunpack.c.l.b16 %v155
    %v731 = vunpack.c.l.b16 %v156
    %v732 = vunpack.c.l.b16 %v157
    %v733 = vunpack.c.l.b16 %v158
    %v734 = vunpack.c.l.b16 %v159
    %v735 = vunpack.c.l.b16 %v160
    %v736 = vunpack.c.l.b16 %v161
    %v737 = vunpack.c.l.b16 %v162
    %v738 = vunpack.c.l.b16 %v163
    %v739 = vunpack.c.l.b16 %v164
    %v740 = vunpack.c.l.b16 %v165
    %v741 = vunpack.c.l.b16 %v166
    %v742 = vunpack.c.l.b16 %v167
    %v743 = vunpack.c.l.b16 %v168
    %v744 = vunpack.c.l.b16 %v169
    %v745 = vunpack.c.l.b16 %v170
    %v746 = vunpack.c.l.b16 %v171
    %v747 = vunpack.c.l.b16 %v172
    %v748 = vunpack.c.l.b16 %v173
    %v749 = vunpack.c.l.b16 %v174
    %v750 = vunpack.c.l.b16 %v175
    %v751 = vunpack.c.l.b16 %v176
    %v752 = vunpack.c.l.b16 %v177
    %v753 = vunpack.c.l.b16 %v178
    %v754 = vunpack.c.l.b16 %v179
    %v755 = vunpack.c.l.b16 %v180
    %v756 = vunpack.c.l.b16 %v181
    %v757 = vunpack.c.l.b16 %v182
    %v758 = vunpack.c.l.b16 %v183
    %v759 = vunpack.c.l.b16 %v184
    %v760 = vunpack.c.l.b16 %v185
    %v761 = vunpack.c.l.b16 %v186
    %v762 = vunpack.c.l.b16 %v187
    %v763 = vunpack.c.l.b16 %v188
    %v764 = vunpack.c.l.b16 %v189
    %v765 = vunpack.c.l.b16 %v190
    %v766 = vunpack.c.l.b16 %v191
    %v767 = vunpack.c.l.b16 %v192
    %v768 = vunpack.c.l.b16 %v193
    %v769 = vunpack.c.l.b16 %v194
    %v770 = vunpack.c.l.b16 %v195
    %v771 = vunpack.c.l.b16 %v196
    %v772 = vunpack.c.l.b16 %v197
    %v773 = vunpack.c.l.b16 %v198
    %v774 = vunpack.c.l.b16 %v199
    %v775 = vunpack.c.l.b16 %v200
    %v776 = vunpack.c.l.b16 %v201
    %v777 = vunpack.c.l.b16 %v202
    %v778 = vunpack.c.l.b16 %v203
    %v779 = vunpack.c.l.b16 %v204
    %v780 = vunpack.c.l.b16 %v205
    %v781 = vunpack.c.l.b16 %v206
    %v782 = vunpack.c.l.b16 %v207
    %v783 = vunpack.c.l.b16 %v208
    %v784 = vunpack.c.l.b16 %v209
    %v785 = vunpack.c.l.b16 %v210
    %v786 = vunpack.c.l.b16 %v211
    %v787 = vunpack.c.l.b16 %v212
    %v788 = vunpack.c.l.b16 %v213
    %v789 = vunpack.c.l.b16 %v214
    %v790 = vunpack.c.l.b16 %v215
    %v791 = vunpack.c.l.b16 %v216
    %v792 = vunpack.c.l.b16 %v217
    %v793 = vunpack.c.l.b16 %v218
    %v794 = vunpack.c.l.b16 %v219
    %v795 = vunpack.c.l.b16 %v220
    %v796 = vunpack.c.l.b16 %v221
    %v797 = vunpack.c.l.b16 %v222
    %v798 = vunpack.c.l.b16 %v223
    %v799 = vunpack.c.l.b16 %v224
    %v800 = vunpack.c.l.b16 %v225
    %v801 = vunpack.c.l.b16 %v226
    %v802 = vunpack.c.l.b16 %v227
    %v803 = vunpack.c.l.b16 %v228
    %v804 = vunpack.c.l.b16 %v229
    %v805 = vunpack.c.l.b16 %v230
    %v806 = vunpack.c.l.b16 %v231
    %v807 = vunpack.c.l.b16 %v232
    %v808 = vunpack.c.l.b16 %v233
    %v809 = vunpack.c.l.b16 %v234
    %v810 = vunpack.c.l.b16 %v235
    %v811 = vunpack.c.l.b16 %v236
    %v812 = vunpack.c.l.b16 %v237
    %v813 = vunpack.c.l.b16 %v238
    %v814 = vunpack.c.l.b16 %v239
    %v815 = vunpack.c.l.b16 %v240
    %v816 = vunpack.c.l.b16 %v241
    %v817 = vunpack.c.l.b16 %v242
    %v818 = vunpack.c.l.b16 %v243
    %v819 = vunpack.c.l.b16 %v244
    %v820 = vunpack.c.l.b16 %v245
    %v821 = vunpack.c.l.b16 %v246
    %v822 = vunpack.c.l.b16 %v247
    %v823 = vunpack.c.l.b16 %v248
    %v824 = vunpack.c.l.b16 %v249
    %v825 = vunpack.c.l.b16 %v250
    %v826 = vunpack.c.l.b16 %v251
    %v827 = vunpack.c.l.b16 %v252
    %v828 = vunpack.c.l.b16 %v253
    %v829 = vunpack.c.l.b16 %v254
    %v830 = vunpack.c.l.b16 %v255
    %v831 = vunpack.c.l.b16 %v256
    %v832 = vunpack.c.l.b16 %v257
    %v833 = vunpack.c.l.b16 %v258
    %v834 = vunpack.c.l.b16 %v259
    %v835 = vunpack.c.l.b16 %v260
    %v836 = vunpack.c.l.b16 %v261
    %v837 = vunpack.c.l.b16 %v262
    %v838 = vunpack.c.l.b16 %v263
    %v839 = vunpack.c.l.b16 %v264
    %v840 = vunpack.c.l.b16 %v265
    %v841 = vunpack.c.l.b16 %v266
    %v842 = vunpack.c.l.b16 %v267
    %v843 = vunpack.c.l.b16 %v268
    %v844 = vunpack.c.l.b16 %v269
    %v845 = vunpack.c.l.b16 %v270
    %v846 = vunpack.c.l.b16 %v271
    %v847 = vunpack.c.l.b16 %v272
    %v848 = vunpack.c.l.b16 %v273
    %v849 = vunpack.c.l.b16 %v274
    %v850 = vunpack.c.l.b16 %v275
    %v851 = vunpack.c.l.b16 %v276
    %v852 = vunpack.c.l.b16 %v277
    %v853 = vunpack.c.l.b16 %v278
    %v854 = vunpack.c.l.b16 %v279
    %v855 = vpack.c.b16 %v600, %v599
    %v856 = vpack.c.b16 %v602, %v601
    %v857 = vpack.c.b16 %v604, %v603
    %v858 = vpack.c.b16 %v606, %v605
    %v859 = vpack.c.b16 %v608, %v607
    %v860 = vpack.c.b16 %v610, %v609
    %v861 = vpack.c.b16 %v612, %v611
    %v862 = vpack.c.b16 %v614, %v613
    %v863 = vpack.c.b16 %v616, %v615
    %v864 = vpack.c.b16 %v618, %v617
    %v865 = vpack.c.b16 %v620, %v619
    %v866 = vpack.c.b16 %v622, %v621
    %v867 = vpack.c.b16 %v624, %v623
    %v868 = vpack.c.b16 %v626, %v625
    %v869 = vpack.c.b16 %v628, %v627
    %v870 = vpack.c.b16 %v630, %v629
    %v871 = vpack.c.b16 %v632, %v631
    %v872 = vpack.c.b16 %v634, %v633
    %v873 = vpack.c.b16 %v636, %v635
    %v874 = vpack.c.b16 %v638, %v637
    %v875 = vpack.c.b16 %v640, %v639
    %v876 = vpack.c.b16 %v642, %v641
    %v877 = vpack.c.b16 %v644, %v643
    %v878 = vpack.c.b16 %v646, %v645
    %v879 = vpack.c.b16 %v648, %v647
    %v880 = vpack.c.b16 %v650, %v649
    %v881 = vpack.c.b16 %v652, %v651
    %v882 = vpack.c.b16 %v654, %v653
    %v883 = vpack.c.b16 %v656, %v655
    %v884 = vpack.c.b16 %v658, %v657
    %v885 = vpack.c.b16 %v660, %v659
    %v886 = vpack.c.b16 %v662, %v661
    %v887 = vpack.c.b16 %v664, %v663
    %v888 = vpack.c.b16 %v666, %v665
    %v889 = vpack.c.b16 %v668, %v667
    %v890 = vpack.c.b16 %v670, %v669
    %v891 = vpack.c.b16 %v672, %v671
    %v892 = vpack.c.b16 %v674, %v673
    %v893 = vpack.c.b16 %v676, %v675
    %v894 = vpack.c.b16 %v678, %v677
    %v895 = vpack.c.b16 %v680, %v679
    %v896 = vpack.c.b16 %v682, %v681
    %v897 = vpack.c.b16 %v684, %v683
    %v898 = vpack.c.b16 %v686, %v685
    %v899 = vpack.c.b16 %v688, %v687
    %v900 = vpack.c.b16 %v690, %v689
    %v901 = vpack.c.b16 %v692, %v691
    %v902 = vpack.c.b16 %v694, %v693
    %v903 = vpack.c.b16 %v696, %v695
    %v904 = vpack.c.b16 %v698, %v697
    %v905 = vpack.c.b16 %v700, %v699
    %v906 = vpack.c.b16 %v702, %v701
    %v907 = vpack.c.b16 %v704, %v703
    %v908 = vpack.c.b16 %v706, %v705
    %v909 = vpack.c.b16 %v708, %v707
    %v910 = vpack.c.b16 %v710, %v709
    %v911 = vpack.c.b16 %v712, %v711
    %v912 = vpack.c.b16 %v714, %v713
    %v913 = vpack.c.b16 %v716, %v715
    %v914 = vpack.c.b16 %v718, %v717
    %v915 = vpack.c.b16 %v720, %v719
    %v916 = vpack.c.b16 %v722, %v721
    %v917 = vpack.c.b16 %v724, %v723
    %v918 = vpack.c.b16 %v726, %v725
    %v919 = vpack.c.b16 %v728, %v727
    %v920 = vpack.c.b16 %v730, %v729
    %v921 = vpack.c.b16 %v732, %v731
    %v922 = vpack.c.b16 %v734, %v733
    %v923 = vpack.c.b16 %v736, %v735
    %v924 = vpack.c.b16 %v738, %v737
    %v925 = vpack.c.b16 %v740, %v739
    %v926 = vpack.c.b16 %v742, %v741
    %v927 = vpack.c.b16 %v744, %v743
    %v928 = vpack.c.b16 %v746, %v745
    %v929 = vpack.c.b16 %v748, %v747
    %v930 = vpack.c.b16 %v750, %v749
    %v931 = vpack.c.b16 %v752, %v751
    %v932 = vpack.c.b16 %v754, %v753
    %v933 = vpack.c.b16 %v756, %v755
    %v934 = vpack.c.b16 %v758, %v757
    %v935 = vpack.c.b16 %v760, %v759
    %v936 = vpack.c.b16 %v762, %v761
    %v937 = vpack.c.b16 %v764, %v763
    %v938 = vpack.c.b16 %v766, %v765
    %v939 = vpack.c.b16 %v768, %v767
    %v940 = vpack.c.b16 %v770, %v769
    %v941 = vpack.c.b16 %v772, %v771
    %v942 = vpack.c.b16 %v774, %v773
    %v943 = vpack.c.b16 %v776, %v775
    %v944 = vpack.c.b16 %v778, %v777
    %v945 = vpack.c.b16 %v780, %v779
    %v946 = vpack.c.b16 %v782, %v781
    %v947 = vpack.c.b16 %v784, %v783
    %v948 = vpack.c.b16 %v786, %v785
    %v949 = vpack.c.b16 %v788, %v787
    %v950 = vpack.c.b16 %v790, %v789
    %v951 = vpack.c.b16 %v792, %v791
    %v952 = vpack.c.b16 %v794, %v793
    %v953 = vpack.c.b16 %v796, %v795
    %v954 = vpack.c.b16 %v798, %v797
    %v955 = vpack.c.b16 %v800, %v799
    %v956 = vpack.c.b16 %v802, %v801
    %v957 = vpack.c.b16 %v804, %v803
    %v958 = vpack.c.b16 %v806, %v805
    %v959 = vpack.c.b16 %v808, %v807
    %v960 = vpack.c.b16 %v810, %v809
    %v961 = vpack.c.b16 %v812, %v811
    %v962 = vpack.c.b16 %v814, %v813
    %v963 = vpack.c.b16 %v816, %v815
    %v964 = vpack.c.b16 %v818, %v817
    %v965 = vpack.c.b16 %v820, %v819
    %v966 = vpack.c.b16 %v822, %v821
    %v967 = vpack.c.b16 %v824, %v823
    %v968 = vpack.c.b16 %v826, %v825
    %v969 = vpack.c.b16 %v828, %v827
    %v970 = vpack.c.b16 %v830, %v829
    %v971 = vpack.c.b16 %v832, %v831
    %v972 = vpack.c.b16 %v834, %v833
    %v973 = vpack.c.b16 %v836, %v835
    %v974 = vpack.c.b16 %v838, %v837
    %v975 = vpack.c.b16 %v840, %v839
    %v976 = vpack.c.b16 %v842, %v841
    %v977 = vpack.c.b16 %v844, %v843
    %v978 = vpack.c.b16 %v846, %v845
    %v979 = vpack.c.b16 %v848, %v847
    %v980 = vpack.c.b16 %v850, %v849
    %v981 = vpack.c.b16 %v852, %v851
    %v982 = vpack.c.b16 %v854, %v853
    %1111 = vmatprep.subr.bf16.mxu0 0
    %1112 = vmatpush1.bf16.msra.mxu0 %v855
    %1113 = vmatprep.subr.bf16.mxu0 0
    %1114 = vmatpush1.bf16.msra.mxu0 %v856
    %1115 = vmatprep.subr.bf16.mxu0 0
    %1116 = vmatpush1.bf16.msra.mxu0 %v857
    %1117 = vmatprep.subr.bf16.mxu0 0
    %1118 = vmatpush1.bf16.msra.mxu0 %v858
    %1119 = vmatprep.subr.bf16.mxu0 0
    %1120 = vmatpush1.bf16.msra.mxu0 %v859
    %1121 = vmatprep.subr.bf16.mxu0 0
    %1122 = vmatpush1.bf16.msra.mxu0 %v860
    %1123 = vmatprep.subr.bf16.mxu0 0
    %1124 = vmatpush1.bf16.msra.mxu0 %v861
    %1125 = vmatprep.subr.bf16.mxu0 0
    %1126 = vmatpush1.bf16.msra.mxu0 %v862
    %1127 = vmatprep.subr.bf16.mxu0 0
    %1128 = vmatpush1.bf16.msra.mxu0 %v863
    %1129 = vmatprep.subr.bf16.mxu0 0
    %1130 = vmatpush1.bf16.msra.mxu0 %v864
    %1131 = vmatprep.subr.bf16.mxu0 0
    %1132 = vmatpush1.bf16.msra.mxu0 %v865
    %1133 = vmatprep.subr.bf16.mxu0 0
    %1134 = vmatpush1.bf16.msra.mxu0 %v866
    %1135 = vmatprep.subr.bf16.mxu0 0
    %1136 = vmatpush1.bf16.msra.mxu0 %v867
    %1137 = vmatprep.subr.bf16.mxu0 0
    %1138 = vmatpush1.bf16.msra.mxu0 %v868
    %1139 = vmatprep.subr.bf16.mxu0 0
    %1140 = vmatpush1.bf16.msra.mxu0 %v869
    %1141 = vmatprep.subr.bf16.mxu0 0
    %1142 = vmatpush1.bf16.msra.mxu0 %v870
    %1143 = vmatprep.mubr.bf16.mxu0 %v312
    %1144 = vmatmul.mubr.bf16.gmra.mrb[0].mxu0 %v311
    %v1145 = vpop.f32.mrb[0].mxu0
    %v1146 = vadd.f32 %v285, %v1145
    %v1147 = vpop.f32.mrb[0].mxu0
    %v1148 = vpop.f32.mrb[0].mxu0
    %v1149 = vpop.f32.mrb[0].mxu0
    %1150 = vdwg.mxu0
    %1151 = vmatprep.subr.bf16.mxu0 0
    %1152 = vmatpush1.bf16.msra.mxu0 %v871
    %1153 = vmatprep.subr.bf16.mxu0 0
    %1154 = vmatpush1.bf16.msra.mxu0 %v872
    %1155 = vmatprep.subr.bf16.mxu0 0
    %1156 = vmatpush1.bf16.msra.mxu0 %v873
    %1157 = vmatprep.subr.bf16.mxu0 0
    %1158 = vmatpush1.bf16.msra.mxu0 %v874
    %1159 = vmatprep.subr.bf16.mxu0 0
    %1160 = vmatpush1.bf16.msra.mxu0 %v875
    %1161 = vmatprep.subr.bf16.mxu0 0
    %1162 = vmatpush1.bf16.msra.mxu0 %v876
    %1163 = vmatprep.subr.bf16.mxu0 0
    %1164 = vmatpush1.bf16.msra.mxu0 %v877
    %1165 = vmatprep.subr.bf16.mxu0 0
    %1166 = vmatpush1.bf16.msra.mxu0 %v878
    %1167 = vmatprep.subr.bf16.mxu0 0
    %1168 = vmatpush1.bf16.msra.mxu0 %v879
    %1169 = vmatprep.subr.bf16.mxu0 0
    %1170 = vmatpush1.bf16.msra.mxu0 %v880
    %1171 = vmatprep.subr.bf16.mxu0 0
    %1172 = vmatpush1.bf16.msra.mxu0 %v881
    %1173 = vmatprep.subr.bf16.mxu0 0
    %1174 = vmatpush1.bf16.msra.mxu0 %v882
    %1175 = vmatprep.subr.bf16.mxu0 0
    %1176 = vmatpush1.bf16.msra.mxu0 %v883
    %1177 = vmatprep.subr.bf16.mxu0 0
    %1178 = vmatpush1.bf16.msra.mxu0 %v884
    %1179 = vmatprep.subr.bf16.mxu0 0
    %1180 = vmatpush1.bf16.msra.mxu0 %v885
    %1181 = vmatprep.subr.bf16.mxu0 0
    %1182 = vmatpush1.bf16.msra.mxu0 %v886
    %1183 = vmatprep.mubr.bf16.mxu0 %v314
    %1184 = vmatmul.mubr.bf16.gmra.mrb[0].mxu0 %v313
    %v1185 = vpop.f32.mrb[0].mxu0
    %v1186 = vadd.f32 %v1146, %v1185
    %v1187 = vpop.f32.mrb[0].mxu0
    %v1188 = vpop.f32.mrb[0].mxu0
    %v1189 = vpop.f32.mrb[0].mxu0
    %1190 = vdwg.mxu0
    %1191 = vmatprep.subr.bf16.mxu0 0
    %1192 = vmatpush1.bf16.msra.mxu0 %v887
    %1193 = vmatprep.subr.bf16.mxu0 0
    %1194 = vmatpush1.bf16.msra.mxu0 %v888
    %1195 = vmatprep.subr.bf16.mxu0 0
    %1196 = vmatpush1.bf16.msra.mxu0 %v889
    %1197 = vmatprep.subr.bf16.mxu0 0
    %1198 = vmatpush1.bf16.msra.mxu0 %v890
    %1199 = vmatprep.subr.bf16.mxu0 0
    %1200 = vmatpush1.bf16.msra.mxu0 %v891
    %1201 = vmatprep.subr.bf16.mxu0 0
    %1202 = vmatpush1.bf16.msra.mxu0 %v892
    %1203 = vmatprep.subr.bf16.mxu0 0
    %1204 = vmatpush1.bf16.msra.mxu0 %v893
    %1205 = vmatprep.subr.bf16.mxu0 0
    %1206 = vmatpush1.bf16.msra.mxu0 %v894
    %1207 = vmatprep.subr.bf16.mxu0 0
    %1208 = vmatpush1.bf16.msra.mxu0 %v895
    %1209 = vmatprep.subr.bf16.mxu0 0
    %1210 = vmatpush1.bf16.msra.mxu0 %v896
    %1211 = vmatprep.subr.bf16.mxu0 0
    %1212 = vmatpush1.bf16.msra.mxu0 %v897
    %1213 = vmatprep.subr.bf16.mxu0 0
    %1214 = vmatpush1.bf16.msra.mxu0 %v898
    %1215 = vmatprep.subr.bf16.mxu0 0
    %1216 = vmatpush1.bf16.msra.mxu0 %v899
    %1217 = vmatprep.subr.bf16.mxu0 0
    %1218 = vmatpush1.bf16.msra.mxu0 %v900
    %1219 = vmatprep.subr.bf16.mxu0 0
    %1220 = vmatpush1.bf16.msra.mxu0 %v901
    %1221 = vmatprep.subr.bf16.mxu0 0
    %1222 = vmatpush1.bf16.msra.mxu0 %v902
    %1223 = vmatprep.mubr.bf16.mxu0 %v316
    %1224 = vmatmul.mubr.bf16.gmra.mrb[0].mxu0 %v315
    %v1225 = vpop.f32.mrb[0].mxu0
    %v1226 = vadd.f32 %v1186, %v1225
    %v1227 = vpop.f32.mrb[0].mxu0
    %v1228 = vpop.f32.mrb[0].mxu0
    %v1229 = vpop.f32.mrb[0].mxu0
    %1230 = vdwg.mxu0
    %1231 = vmatprep.subr.bf16.mxu0 0
    %1232 = vmatpush1.bf16.msra.mxu0 %v903
    %1233 = vmatprep.subr.bf16.mxu0 0
    %1234 = vmatpush1.bf16.msra.mxu0 %v904
    %1235 = vmatprep.subr.bf16.mxu0 0
    %1236 = vmatpush1.bf16.msra.mxu0 %v905
    %1237 = vmatprep.subr.bf16.mxu0 0
    %1238 = vmatpush1.bf16.msra.mxu0 %v906
    %1239 = vmatprep.subr.bf16.mxu0 0
    %1240 = vmatpush1.bf16.msra.mxu0 %v907
    %1241 = vmatprep.subr.bf16.mxu0 0
    %1242 = vmatpush1.bf16.msra.mxu0 %v908
    %1243 = vmatprep.subr.bf16.mxu0 0
    %1244 = vmatpush1.bf16.msra.mxu0 %v909
    %1245 = vmatprep.subr.bf16.mxu0 0
    %1246 = vmatpush1.bf16.msra.mxu0 %v910
    %1247 = vmatprep.subr.bf16.mxu0 0
    %1248 = vmatpush1.bf16.msra.mxu0 %v911
    %1249 = vmatprep.subr.bf16.mxu0 0
    %1250 = vmatpush1.bf16.msra.mxu0 %v912
    %1251 = vmatprep.subr.bf16.mxu0 0
    %1252 = vmatpush1.bf16.msra.mxu0 %v913
    %1253 = vmatprep.subr.bf16.mxu0 0
    %1254 = vmatpush1.bf16.msra.mxu0 %v914
    %1255 = vmatprep.subr.bf16.mxu0 0
    %1256 = vmatpush1.bf16.msra.mxu0 %v915
    %1257 = vmatprep.subr.bf16.mxu0 0
    %1258 = vmatpush1.bf16.msra.mxu0 %v916
    %1259 = vmatprep.subr.bf16.mxu0 0
    %1260 = vmatpush1.bf16.msra.mxu0 %v917
    %1261 = vmatprep.subr.bf16.mxu0 0
    %1262 = vmatpush1.bf16.msra.mxu0 %v918
    %1263 = vmatprep.mubr.bf16.mxu0 %v318
    %1264 = vmatmul.mubr.bf16.gmra.mrb[0].mxu0 %v317
    %v1265 = vpop.f32.mrb[0].mxu0
    %v1266 = vadd.f32 %v1226, %v1265
    %v1267 = vpop.f32.mrb[0].mxu0
    %v1268 = vpop.f32.mrb[0].mxu0
    %v1269 = vpop.f32.mrb[0].mxu0
    %1270 = vdwg.mxu0
    %1271 = vmatprep.subr.bf16.mxu0 0
    %1272 = vmatpush1.bf16.msra.mxu0 %v919
    %1273 = vmatprep.subr.bf16.mxu0 0
    %1274 = vmatpush1.bf16.msra.mxu0 %v920
    %1275 = vmatprep.subr.bf16.mxu0 0
    %1276 = vmatpush1.bf16.msra.mxu0 %v921
    %1277 = vmatprep.subr.bf16.mxu0 0
    %1278 = vmatpush1.bf16.msra.mxu0 %v922
    %1279 = vmatprep.subr.bf16.mxu0 0
    %1280 = vmatpush1.bf16.msra.mxu0 %v923
    %1281 = vmatprep.subr.bf16.mxu0 0
    %1282 = vmatpush1.bf16.msra.mxu0 %v924
    %1283 = vmatprep.subr.bf16.mxu0 0
    %1284 = vmatpush1.bf16.msra.mxu0 %v925
    %1285 = vmatprep.subr.bf16.mxu0 0
    %1286 = vmatpush1.bf16.msra.mxu0 %v926
    %1287 = vmatprep.subr.bf16.mxu0 0
    %1288 = vmatpush1.bf16.msra.mxu0 %v927
    %1289 = vmatprep.subr.bf16.mxu0 0
    %1290 = vmatpush1.bf16.msra.mxu0 %v928
    %1291 = vmatprep.subr.bf16.mxu0 0
    %1292 = vmatpush1.bf16.msra.mxu0 %v929
    %1293 = vmatprep.subr.bf16.mxu0 0
    %1294 = vmatpush1.bf16.msra.mxu0 %v930
    %1295 = vmatprep.subr.bf16.mxu0 0
    %1296 = vmatpush1.bf16.msra.mxu0 %v931
    %1297 = vmatprep.subr.bf16.mxu0 0
    %1298 = vmatpush1.bf16.msra.mxu0 %v932
    %1299 = vmatprep.subr.bf16.mxu0 0
    %1300 = vmatpush1.bf16.msra.mxu0 %v933
    %1301 = vmatprep.subr.bf16.mxu0 0
    %1302 = vmatpush1.bf16.msra.mxu0 %v934
    %1303 = vmatprep.mubr.bf16.mxu0 %v320
    %1304 = vmatmul.mubr.bf16.gmra.mrb[0].mxu0 %v319
    %v1305 = vpop.f32.mrb[0].mxu0
    %v1306 = vadd.f32 %v1266, %v1305
    %v1307 = vpop.f32.mrb[0].mxu0
    %v1308 = vpop.f32.mrb[0].mxu0
    %v1309 = vpop.f32.mrb[0].mxu0
    %1310 = vdwg.mxu0
    %1311 = vmatprep.subr.bf16.mxu0 0
    %1312 = vmatpush1.bf16.msra.mxu0 %v935
    %1313 = vmatprep.subr.bf16.mxu0 0
    %1314 = vmatpush1.bf16.msra.mxu0 %v936
    %1315 = vmatprep.subr.bf16.mxu0 0
    %1316 = vmatpush1.bf16.msra.mxu0 %v937
    %1317 = vmatprep.subr.bf16.mxu0 0
    %1318 = vmatpush1.bf16.msra.mxu0 %v938
    %1319 = vmatprep.subr.bf16.mxu0 0
    %1320 = vmatpush1.bf16.msra.mxu0 %v939
    %1321 = vmatprep.subr.bf16.mxu0 0
    %1322 = vmatpush1.bf16.msra.mxu0 %v940
    %1323 = vmatprep.subr.bf16.mxu0 0
    %1324 = vmatpush1.bf16.msra.mxu0 %v941
    %1325 = vmatprep.subr.bf16.mxu0 0
    %1326 = vmatpush1.bf16.msra.mxu0 %v942
    %1327 = vmatprep.subr.bf16.mxu0 0
    %1328 = vmatpush1.bf16.msra.mxu0 %v943
    %1329 = vmatprep.subr.bf16.mxu0 0
    %1330 = vmatpush1.bf16.msra.mxu0 %v944
    %1331 = vmatprep.subr.bf16.mxu0 0
    %1332 = vmatpush1.bf16.msra.mxu0 %v945
    %1333 = vmatprep.subr.bf16.mxu0 0
    %1334 = vmatpush1.bf16.msra.mxu0 %v946
    %1335 = vmatprep.subr.bf16.mxu0 0
    %1336 = vmatpush1.bf16.msra.mxu0 %v947
    %1337 = vmatprep.subr.bf16.mxu0 0
    %1338 = vmatpush1.bf16.msra.mxu0 %v948
    %1339 = vmatprep.subr.bf16.mxu0 0
    %1340 = vmatpush1.bf16.msra.mxu0 %v949
    %1341 = vmatprep.subr.bf16.mxu0 0
    %1342 = vmatpush1.bf16.msra.mxu0 %v950
    %1343 = vmatprep.mubr.bf16.mxu0 %v322
    %1344 = vmatmul.mubr.bf16.gmra.mrb[0].mxu0 %v321
    %v1345 = vpop.f32.mrb[0].mxu0
    %v1346 = vadd.f32 %v1306, %v1345
    %v1347 = vpop.f32.mrb[0].mxu0
    %v1348 = vpop.f32.mrb[0].mxu0
    %v1349 = vpop.f32.mrb[0].mxu0
    %1350 = vdwg.mxu0
    %1351 = vmatprep.subr.bf16.mxu0 0
    %1352 = vmatpush1.bf16.msra.mxu0 %v951
    %1353 = vmatprep.subr.bf16.mxu0 0
    %1354 = vmatpush1.bf16.msra.mxu0 %v952
    %1355 = vmatprep.subr.bf16.mxu0 0
    %1356 = vmatpush1.bf16.msra.mxu0 %v953
    %1357 = vmatprep.subr.bf16.mxu0 0
    %1358 = vmatpush1.bf16.msra.mxu0 %v954
    %1359 = vmatprep.subr.bf16.mxu0 0
    %1360 = vmatpush1.bf16.msra.mxu0 %v955
    %1361 = vmatprep.subr.bf16.mxu0 0
    %1362 = vmatpush1.bf16.msra.mxu0 %v956
    %1363 = vmatprep.subr.bf16.mxu0 0
    %1364 = vmatpush1.bf16.msra.mxu0 %v957
    %1365 = vmatprep.subr.bf16.mxu0 0
    %1366 = vmatpush1.bf16.msra.mxu0 %v958
    %1367 = vmatprep.subr.bf16.mxu0 0
    %1368 = vmatpush1.bf16.msra.mxu0 %v959
    %1369 = vmatprep.subr.bf16.mxu0 0
    %1370 = vmatpush1.bf16.msra.mxu0 %v960
    %1371 = vmatprep.subr.bf16.mxu0 0
    %1372 = vmatpush1.bf16.msra.mxu0 %v961
    %1373 = vmatprep.subr.bf16.mxu0 0
    %1374 = vmatpush1.bf16.msra.mxu0 %v962
    %1375 = vmatprep.subr.bf16.mxu0 0
    %1376 = vmatpush1.bf16.msra.mxu0 %v963
    %1377 = vmatprep.subr.bf16.mxu0 0
    %1378 = vmatpush1.bf16.msra.mxu0 %v964
    %1379 = vmatprep.subr.bf16.mxu0 0
    %1380 = vmatpush1.bf16.msra.mxu0 %v965
    %1381 = vmatprep.subr.bf16.mxu0 0
    %1382 = vmatpush1.bf16.msra.mxu0 %v966
    %1383 = vmatprep.mubr.bf16.mxu0 %v324
    %1384 = vmatmul.mubr.bf16.gmra.mrb[0].mxu0 %v323
    %v1385 = vpop.f32.mrb[0].mxu0
    %v1386 = vadd.f32 %v1346, %v1385
    %v1387 = vpop.f32.mrb[0].mxu0
    %v1388 = vpop.f32.mrb[0].mxu0
    %v1389 = vpop.f32.mrb[0].mxu0
    %1390 = vdwg.mxu0
    %1391 = vmatprep.subr.bf16.mxu0 0
    %1392 = vmatpush1.bf16.msra.mxu0 %v967
    %1393 = vmatprep.subr.bf16.mxu0 0
    %1394 = vmatpush1.bf16.msra.mxu0 %v968
    %1395 = vmatprep.subr.bf16.mxu0 0
    %1396 = vmatpush1.bf16.msra.mxu0 %v969
    %1397 = vmatprep.subr.bf16.mxu0 0
    %1398 = vmatpush1.bf16.msra.mxu0 %v970
    %1399 = vmatprep.subr.bf16.mxu0 0
    %1400 = vmatpush1.bf16.msra.mxu0 %v971
    %1401 = vmatprep.subr.bf16.mxu0 0
    %1402 = vmatpush1.bf16.msra.mxu0 %v972
    %1403 = vmatprep.subr.bf16.mxu0 0
    %1404 = vmatpush1.bf16.msra.mxu0 %v973
    %1405 = vmatprep.subr.bf16.mxu0 0
    %1406 = vmatpush1.bf16.msra.mxu0 %v974
    %1407 = vmatprep.subr.bf16.mxu0 0
    %1408 = vmatpush1.bf16.msra.mxu0 %v975
    %1409 = vmatprep.subr.bf16.mxu0 0
    %1410 = vmatpush1.bf16.msra.mxu0 %v976
    %1411 = vmatprep.subr.bf16.mxu0 0
    %1412 = vmatpush1.bf16.msra.mxu0 %v977
    %1413 = vmatprep.subr.bf16.mxu0 0
    %1414 = vmatpush1.bf16.msra.mxu0 %v978
    %1415 = vmatprep.subr.bf16.mxu0 0
    %1416 = vmatpush1.bf16.msra.mxu0 %v979
    %1417 = vmatprep.subr.bf16.mxu0 0
    %1418 = vmatpush1.bf16.msra.mxu0 %v980
    %1419 = vmatprep.subr.bf16.mxu0 0
    %1420 = vmatpush1.bf16.msra.mxu0 %v981
    %1421 = vmatprep.subr.bf16.mxu0 0
    %1422 = vmatpush1.bf16.msra.mxu0 %v982
    %1423 = vmatprep.mubr.bf16.mxu0 %v326
    %1424 = vmatmul.mubr.bf16.gmra.mrb[0].mxu0 %v325
    %v1425 = vpop.f32.mrb[0].mxu0
    %v1426 = vadd.f32 %v1386, %v1425
    %v1427 = vpop.f32.mrb[0].mxu0
    %v1428 = vpop.f32.mrb[0].mxu0
    %v1429 = vpop.f32.mrb[0].mxu0
    %1430 = vdwg.mxu0
    %v1431 = vmul.f32 %v1426, %v1426
    %vm1432 = vcmask 259072
    %v1433 = vsel %vm1432, %v1431, 0.0
    %1434 = vadd.xlane.f32.xlu0 %v1433
    %v1435 = vpop.xlane.xlu0 %1434
    %v1436 = vadd.f32 %v1435, 1e-12
    %v1437 = vrsqrt.pop %v1436
    %v1438 = vmul.f32 %v1426, %v1437
    %1439 = vst.msk [vmem:[#allocation2] sm:$0x3f] %vm1432, %v1438
    // Predicated region
    $region14: #{tpu_custom_call.1} parent=1 // pred_check
      _
    $region15: #{tpu_custom_call.1} parent=1 // pred_check_branch
      %1441 = sbr.rel (0) target = $region17
    $region16: #{tpu_custom_call.1} parent=1 // pred_region
      %s1443 = ssub.s32 128, 128
      %1444 = vsyncadd [#allocation3], %s1443
      %s1446 = sshll.u32 [#allocation2], 4
      %s1447 = int_to_ptr.vmem [resolvable:$true] %s1446
      %1449 = dma.vmem_to_hbm [thread:$0]  %s1447, 128, %s3, [#allocation3]
    $region17: #{tpu_custom_call.1} parent=1 // pred_fallthru
      _
    // Predicated region
    $region18: #{tpu_custom_call.1} parent=1 // pred_check
      _
    $region19: #{tpu_custom_call.1} parent=1 // pred_check_branch
      %1451 = sbr.rel (0) target = $region21
    $region20: #{tpu_custom_call.1} parent=1 // pred_region
      %1452 = dma.done [#allocation3], 128
    $region21: #{tpu_custom_call.1} parent=1 // pred_fallthru
      _
    %1453 = vsyncpa [#allocation3], 1

</llo_original>
